<compile_context>
chip_gen: v6e
topology: v6e:2x2x1
jax: 0.10.0
libtpu: 0.0.40
codegen_flags: <defaults>
</compile_context>

<pallas_src>
import jax
import jax.numpy as jnp
import numpy as np
from jax.experimental import pallas as pl
from jax.experimental.pallas import tpu as pltpu

# ---- synthetic SMPLH-like dimensions (small) ----
NUM_BODY_JOINTS = 21
NUM_HAND_JOINTS = 15
NUM_JOINTS = NUM_BODY_JOINTS + 2 * NUM_HAND_JOINTS   # 51 (excluding root)
J = NUM_JOINTS + 1                                   # 52 joints incl. root
NUM_BETAS = 16
V = 64                                               # synthetic vertex count (real SMPLH: 6890)
P = 9 * (J - 1)                                      # pose-blendshape feature dim = 459

K_RAW = NUM_BETAS + P                                # 475 (fused blend input features)
PAD_K = 512                                          # lane-padded feature dim
J_PAD = 64                                           # sublane/MXU-friendly padded joint count


# ------------------------------------------------------------------
# Pallas kernel 1: fused shape+pose blendshapes  AND  betas -> joints regression
# (single invocation, whole-array VMEM blocks; one shared activation X)
# ------------------------------------------------------------------
def _shape_pose_kernel(x_ref, vtemp_ref, wcat_ref, jtemp_ref, jdirs_ref,
                       vposed_ref, joints_ref):
    x = x_ref[...]                                                   # (B, PAD_K) bf16
    # planar v_posed: columns ordered [x-plane | y-plane | z-plane]
    vposed_ref[...] = vtemp_ref[...] + jnp.dot(
        x, wcat_ref[...], preferred_element_type=jnp.float32)        # (B, 3V) f32
    # joints are linear in betas only (pose rows of jdirs are zero)
    joints_ref[...] = jtemp_ref[...] + jnp.dot(
        x, jdirs_ref[...], preferred_element_type=jnp.float32)       # (B, 3J) f32


def shape_pose_pallas(x, v_template_planar, w_cat, j_template, j_dirs):
    B = x.shape[0]
    vmem = pl.BlockSpec(memory_space=pltpu.MemorySpace.VMEM)
    return pl.pallas_call(
        _shape_pose_kernel,
        out_shape=(jax.ShapeDtypeStruct((B, 3 * V), jnp.float32),
                   jax.ShapeDtypeStruct((B, 3 * J), jnp.float32)),
        in_specs=[vmem] * 5,
        out_specs=(vmem, vmem),
    )(x, v_template_planar, w_cat, j_template, j_dirs)


# ------------------------------------------------------------------
# Pallas kernel 2: linear blend skinning, lane-dense / transposed formulation.
# A is (B*16, J_PAD): per-batch blocks of 16 rows = flattened 4x4 transform elements,
# cols = joints.  W is (J_PAD, V) = lbs_weights^T zero-padded.
# ONE MXU dot for all batches -> T (B*16, V); the elementwise tail runs on dense
# V-lane coordinate planes.
# ------------------------------------------------------------------
def _skinning_kernel(a_ref, w_ref, vp_ref, verts_ref):
    Bsz = vp_ref.shape[0]
    t_all = jnp.dot(a_ref[...], w_ref[...],
                    preferred_element_type=jnp.float32)              # (B*16, V) f32
    for b in range(Bsz):                                             # static unroll (tiny B)
        t = t_all[b * 16:(b + 1) * 16]                               # (16, V)
        vp = vp_ref[b]                                               # (3, V) planar coords
        x, y, z = vp[0:1], vp[1:2], vp[2:3]                          # (1, V) each
        vx = t[0:1] * x + t[1:2] * y + t[2:3] * z + t[3:4]
        vy = t[4:5] * x + t[5:6] * y + t[6:7] * z + t[7:8]
        vz = t[8:9] * x + t[9:10] * y + t[10:11] * z + t[11:12]
        verts_ref[b] = jnp.concatenate([vx, vy, vz], axis=0)         # (3, V)


def skinning_pallas(a_pad_2d, w_lbs_t, vp_b3v):
    B = vp_b3v.shape[0]
    vmem = pl.BlockSpec(memory_space=pltpu.MemorySpace.VMEM)
    return pl.pallas_call(
        _skinning_kernel,
        out_shape=jax.ShapeDtypeStruct((B, 3, V), jnp.float32),
        in_specs=[vmem, vmem, vmem],
        out_specs=vmem,
    )(a_pad_2d, w_lbs_t, vp_b3v)


# ------------------------------------------------------------------
# JAX glue (small, non-hot-path): Rodrigues + kinematic chain
# ------------------------------------------------------------------
def batch_rodrigues(rot_vecs):
    # rot_vecs: (N, 3) axis-angle -> (N, 3, 3).  Note: eps added to rot_vecs before
    # the norm, exactly matching smplx.lbs.batch_rodrigues (torch.norm(rot_vecs + 1e-8)).
    n = rot_vecs.shape[0]
    angle = jnp.linalg.norm(rot_vecs + 1e-8, axis=1, keepdims=True)      # (N,1)
    rot_dir = rot_vecs / angle
    cos = jnp.cos(angle)[:, :, None]
    sin = jnp.sin(angle)[:, :, None]
    rx, ry, rz = rot_dir[:, 0], rot_dir[:, 1], rot_dir[:, 2]
    zeros = jnp.zeros_like(rx)
    K = jnp.stack([zeros, -rz, ry, rz, zeros, -rx, -ry, rx, zeros],
                  axis=1).reshape(n, 3, 3)
    ident = jnp.eye(3, dtype=rot_vecs.dtype)[None]
    return ident + sin * K + (1.0 - cos) * jnp.einsum('nij,njk->nik', K, K)


def batch_rigid_transform(rot_mats, joints, parents):
    # rot_mats: (B, J, 3, 3); joints: (B, J, 3); parents: python list, parents[0] = -1
    B = joints.shape[0]
    par = np.asarray(parents[1:])
    rel_joints = joints.at[:, 1:].add(-joints[:, par])
    tm = jnp.zeros((B, J, 4, 4), dtype=rot_mats.dtype)
    tm = tm.at[:, :, :3, :3].set(rot_mats)
    tm = tm.at[:, :, :3, 3].set(rel_joints)
    tm = tm.at[:, :, 3, 3].set(1.0)
    chain = [tm[:, 0]]
    for i in range(1, J):
        chain.append(jnp.einsum('bij,bjk->bik', chain[parents[i]], tm[:, i]))
    transforms = jnp.stack(chain, axis=1)                                 # (B, J, 4, 4)
    posed_joints = transforms[:, :, :3, 3]
    rj = jnp.einsum('bjmk,bjk->bjm', transforms[:, :, :3, :3], joints)    # R_chain @ j
    rel_transforms = transforms.at[:, :, :3, 3].add(-rj)
    return posed_joints, rel_transforms


# ------------------------------------------------------------------
# Synthetic model parameters (deterministic)
# ------------------------------------------------------------------
def init_body_model_params(key):
    ks = jax.random.split(key, 5)
    v_template = jax.random.normal(ks[0], (V, 3), jnp.float32) * 0.3
    shapedirs = jax.random.normal(ks[1], (V, 3, NUM_BETAS), jnp.float32) * 0.03
    posedirs = jax.random.normal(ks[2], (P, 3 * V), jnp.float32) * 0.01   # interleaved (v,c)
    j_reg_raw = jax.random.uniform(ks[3], (J, V), jnp.float32) + 1e-3
    j_regressor = j_reg_raw / jnp.sum(j_reg_raw, axis=1, keepdims=True)
    lbs_weights = jax.nn.softmax(2.0 * jax.random.normal(ks[4], (V, J), jnp.float32), axis=1)
    parents = [-1] + [max(0, (i - 1) // 2) for i in range(1, J)]          # valid tree
    return dict(v_template=v_template, shapedirs=shapedirs, posedirs=posedirs,
                j_regressor=j_regressor, lbs_weights=lbs_weights, parents=parents)


# ------------------------------------------------------------------
# One-time precompute of kernel-layout constants (planar, padded, bf16)
# ------------------------------------------------------------------
def precompute_kernel_operands(params):
    shapedirs = params['shapedirs']                       # (V, 3, NB)
    posedirs = params['posedirs']                         # (P, 3V) interleaved
    jreg = params['j_regressor']                          # (J, V)
    vt = params['v_template']                             # (V, 3)

    # planar column order: col = c*V + v  (x-plane | y-plane | z-plane)
    w_shape_planar = jnp.transpose(shapedirs, (2, 1, 0)).reshape(NUM_BETAS, 3 * V)
    w_pose_planar = jnp.transpose(posedirs.reshape(P, V, 3), (0, 2, 1)).reshape(P, 3 * V)
    w_cat = jnp.zeros((PAD_K, 3 * V), jnp.float32)
    w_cat = w_cat.at[:NUM_BETAS].set(w_shape_planar)
    w_cat = w_cat.at[NUM_BETAS:NUM_BETAS + P].set(w_pose_planar)

    # joints are linear in betas: precompute regressor-through-shapedirs (interleaved j,c)
    j_shapedirs = jnp.einsum('jv,vcl->ljc', jreg, shapedirs).reshape(NUM_BETAS, 3 * J)
    j_dirs = jnp.zeros((PAD_K, 3 * J), jnp.float32).at[:NUM_BETAS].set(j_shapedirs)
    j_template = (jreg @ vt).reshape(1, 3 * J)

    v_template_planar = vt.T.reshape(1, 3 * V)

    # lbs weights transposed + joint-padded for the skinning contraction
    w_lbs_t = jnp.zeros((J_PAD, V), jnp.float32).at[:J].set(params['lbs_weights'].T)

    return dict(
        w_cat=w_cat.astype(jnp.bfloat16),
        j_dirs=j_dirs.astype(jnp.bfloat16),
        j_template=j_template.astype(jnp.float32),
        v_template_planar=v_template_planar.astype(jnp.float32),
        w_lbs_t=w_lbs_t.astype(jnp.bfloat16),
    )


# ------------------------------------------------------------------
# BodyModel.forward equivalent (jitted core; defaults handled outside jit)
# ------------------------------------------------------------------
def build_body_model(params):
    prep = precompute_kernel_operands(params)
    parents = params['parents']

    @jax.jit
    def core(betas, global_orient, transl, body_pose, left_hand_pose, right_hand_pose):
        B = betas.shape[0]
        full_pose = jnp.concatenate(
            [global_orient, body_pose, left_hand_pose, right_hand_pose], axis=1)  # (B, 3J)
        rot_mats = batch_rodrigues(full_pose.reshape(-1, 3)).reshape(B, J, 3, 3)
        pose_feature = (rot_mats[:, 1:] - jnp.eye(3, dtype=jnp.float32)).reshape(B, P)

        # fused activation [betas | pose_feature | 0-pad] in bf16
        x = jnp.zeros((B, PAD_K), jnp.float32)
        x = x.at[:, :NUM_BETAS].set(betas)
        x = x.at[:, NUM_BETAS:NUM_BETAS + P].set(pose_feature)
        x = x.astype(jnp.bfloat16)

        vposed_planar, joints_flat = shape_pose_pallas(
            x, prep['v_template_planar'], prep['w_cat'], prep['j_template'], prep['j_dirs'])
        joints = joints_flat.reshape(B, J, 3)

        posed_joints, rel_tf = batch_rigid_transform(rot_mats, joints, parents)

        # transforms -> (B*16, J_PAD): per-batch blocks of 16 rows = flattened 4x4
        # elements, cols = joints.  Single 2-D slab so the skinning kernel issues ONE dot.
        a_t = jnp.transpose(rel_tf.reshape(B, J, 16), (0, 2, 1))
        a_pad = jnp.zeros((B, 16, J_PAD), jnp.float32).at[:, :, :J].set(a_t)
        a_pad_2d = a_pad.reshape(B * 16, J_PAD).astype(jnp.bfloat16)

        vp_b3v = vposed_planar.reshape(B, 3, V)                          # planar coord planes
        verts_b3v = skinning_pallas(a_pad_2d, prep['w_lbs_t'], vp_b3v)   # (B, 3, V)

        # epilogue: back to (B, V, 3) API layout + translation (folded here, not in-kernel)
        vertices = jnp.transpose(verts_b3v, (0, 2, 1)) + transl[:, None, :]
        joints_out = posed_joints + transl[:, None, :]
        return vertices, joints_out

    def forward(betas=None, global_orient=None, transl=None, body_pose=None,
                left_hand_pose=None, right_hand_pose=None):
        # replicate the torch defaulting-to-zeros behaviour
        model_vars = [betas, global_orient, body_pose, transl, left_hand_pose, right_hand_pose]
        B = 1
        for var in model_vars:
            if var is not None:
                B = max(B, var.shape[0])
        if global_orient is None:
            global_orient = jnp.zeros((B, 3), jnp.float32)
        if body_pose is None:
            body_pose = jnp.zeros((B, 3 * NUM_BODY_JOINTS), jnp.float32)
        if left_hand_pose is None:
            left_hand_pose = jnp.zeros((B, 3 * NUM_HAND_JOINTS), jnp.float32)
        if right_hand_pose is None:
            right_hand_pose = jnp.zeros((B, 3 * NUM_HAND_JOINTS), jnp.float32)
        if betas is None:
            betas = jnp.zeros((B, NUM_BETAS), jnp.float32)
        if transl is None:
            transl = jnp.zeros((B, 3), jnp.float32)
        return core(betas, global_orient, transl, body_pose, left_hand_pose, right_hand_pose)

    return forward


# ------------------------------------------------------------------
# Pure-JAX reference (same math, f32, no Pallas) for validation
# ------------------------------------------------------------------
def body_model_reference(params, betas, global_orient, transl, body_pose, lh, rh):
    B = betas.shape[0]
    v_shaped = params['v_template'][None] + jnp.einsum('bl,vkl->bvk', betas, params['shapedirs'])
    joints = jnp.einsum('jv,bvk->bjk', params['j_regressor'], v_shaped)
    full_pose = jnp.concatenate([global_orient, body_pose, lh, rh], axis=1)
    rot_mats = batch_rodrigues(full_pose.reshape(-1, 3)).reshape(B, J, 3, 3)
    pose_feature = (rot_mats[:, 1:] - jnp.eye(3, dtype=jnp.float32)).reshape(B, P)
    v_posed = v_shaped + (pose_feature @ params['posedirs']).reshape(B, V, 3)
    posed_joints, A = batch_rigid_transform(rot_mats, joints, params['parents'])
    T = jnp.einsum('vj,bjmn->bvmn', params['lbs_weights'], A)
    vh = jnp.concatenate([v_posed, jnp.ones((B, V, 1), jnp.float32)], axis=-1)
    verts = jnp.einsum('bvmn,bvn->bvm', T, vh)[..., :3]
    return verts + transl[:, None, :], posed_joints + transl[:, None, :]


if __name__ == "__main__":
    params = init_body_model_params(jax.random.PRNGKey(42))
    forward = build_body_model(params)

    B = 2
    key = jax.random.PRNGKey(0)
    k1, k2, k3, k4 = jax.random.split(key, 4)
    betas = 0.5 * jax.random.normal(k1, (B, NUM_BETAS), jnp.float32)
    global_orient = 0.1 * jax.random.normal(k2, (B, 3), jnp.float32)
    body_pose = 0.1 * jax.random.normal(k3, (B, 3 * NUM_BODY_JOINTS), jnp.float32)
    transl = 0.1 * jax.random.normal(k4, (B, 3), jnp.float32)
    # hand poses left as None -> zeros (flat_hand_mean=True path of the module)

    vertices, joints = forward(
        betas=betas, global_orient=global_orient, transl=transl, body_pose=body_pose)
    vertices = jax.block_until_ready(vertices)
    joints = jax.block_until_ready(joints)

    zeros_h = jnp.zeros((B, 3 * NUM_HAND_JOINTS), jnp.float32)
    ref_v, ref_j = body_model_reference(
        params, betas, global_orient, transl, body_pose, zeros_h, zeros_h)

    assert vertices.shape == (B, V, 3) and joints.shape == (B, J, 3)
    assert bool(jnp.all(jnp.isfinite(vertices))) and bool(jnp.all(jnp.isfinite(joints)))
    np.testing.assert_allclose(np.asarray(vertices), np.asarray(ref_v), rtol=5e-2, atol=5e-2)
    np.testing.assert_allclose(np.asarray(joints), np.asarray(ref_j), rtol=5e-2, atol=5e-2)
    print("KERNEL_OK")
</pallas_src>

<mosaic_0001>
module attributes {stable_mosaic.version = 11 : i64} {
  func.func @_shape_pose_kernel(%arg0: memref<2x512xbf16, #tpu.memory_space<vmem>>, %arg1: memref<1x192xf32, #tpu.memory_space<vmem>>, %arg2: memref<512x192xbf16, #tpu.memory_space<vmem>>, %arg3: memref<1x156xf32, #tpu.memory_space<vmem>>, %arg4: memref<512x156xbf16, #tpu.memory_space<vmem>>, %arg5: memref<2x192xf32, #tpu.memory_space<vmem>>, %arg6: memref<2x156xf32, #tpu.memory_space<vmem>>) attributes {dimension_semantics = [], scalar_prefetch = 0 : i64, scratch_operands = 0 : i64, tpu.core_type = #tpu.core_type<tc>} {
    %c0 = arith.constant 0 : index
    %c0_0 = arith.constant 0 : index
    %0 = vector.load %arg0[%c0, %c0_0] : memref<2x512xbf16, #tpu.memory_space<vmem>>, vector<2x512xbf16>
    %c0_1 = arith.constant 0 : index
    %c0_2 = arith.constant 0 : index
    %1 = vector.load %arg1[%c0_1, %c0_2] : memref<1x192xf32, #tpu.memory_space<vmem>>, vector<1x192xf32>
    %c0_3 = arith.constant 0 : index
    %c0_4 = arith.constant 0 : index
    %2 = vector.load %arg2[%c0_3, %c0_4] : memref<512x192xbf16, #tpu.memory_space<vmem>>, vector<512x192xbf16>
    %cst = arith.constant dense<0.000000e+00> : vector<2x192xf32>
    %3 = tpu.matmul %0, %2, %cst {dimension_numbers = #tpu.dot_dimension_numbers<[1], [0], [0], [1], [0, 0, 1, 1], [], []>} : vector<2x512xbf16>, vector<512x192xbf16>, vector<2x192xf32> -> vector<2x192xf32>
    %4 = vector.broadcast %1 : vector<1x192xf32> to vector<2x192xf32>
    %5 = arith.addf %4, %3 : vector<2x192xf32>
    %c0_5 = arith.constant 0 : index
    %c0_6 = arith.constant 0 : index
    %6 = vector.load %arg5[%c0_5, %c0_6] : memref<2x192xf32, #tpu.memory_space<vmem>>, vector<2x192xf32>
    tpu.vector_store %arg5[%c0_5, %c0_6], %5 {strides = array<i32>} : memref<2x192xf32, #tpu.memory_space<vmem>>, vector<2x192xf32>,
    %c0_7 = arith.constant 0 : index
    %c0_8 = arith.constant 0 : index
    %7 = vector.load %arg3[%c0_7, %c0_8] : memref<1x156xf32, #tpu.memory_space<vmem>>, vector<1x156xf32>
    %c0_9 = arith.constant 0 : index
    %c0_10 = arith.constant 0 : index
    %8 = vector.load %arg4[%c0_9, %c0_10] : memref<512x156xbf16, #tpu.memory_space<vmem>>, vector<512x156xbf16>
    %cst_11 = arith.constant dense<0.000000e+00> : vector<2x156xf32>
    %9 = tpu.matmul %0, %8, %cst_11 {dimension_numbers = #tpu.dot_dimension_numbers<[1], [0], [0], [1], [0, 0, 1, 1], [], []>} : vector<2x512xbf16>, vector<512x156xbf16>, vector<2x156xf32> -> vector<2x156xf32>
    %10 = vector.broadcast %7 : vector<1x156xf32> to vector<2x156xf32>
    %11 = arith.addf %10, %9 : vector<2x156xf32>
    %c0_12 = arith.constant 0 : index
    %c0_13 = arith.constant 0 : index
    %12 = vector.load %arg6[%c0_12, %c0_13] : memref<2x156xf32, #tpu.memory_space<vmem>>, vector<2x156xf32>
    tpu.vector_store %arg6[%c0_12, %c0_13], %11 {strides = array<i32>} : memref<2x156xf32, #tpu.memory_space<vmem>>, vector<2x156xf32>,
    return
  }
}

module attributes {stable_mosaic.version = 11 : i64} {
  func.func @_skinning_kernel(%arg0: memref<32x64xbf16, #tpu.memory_space<vmem>>, %arg1: memref<64x64xbf16, #tpu.memory_space<vmem>>, %arg2: memref<2x3x64xf32, #tpu.memory_space<vmem>>, %arg3: memref<2x3x64xf32, #tpu.memory_space<vmem>>) attributes {dimension_semantics = [], scalar_prefetch = 0 : i64, scratch_operands = 0 : i64, tpu.core_type = #tpu.core_type<tc>} {
    %c0 = arith.constant 0 : index
    %c0_0 = arith.constant 0 : index
    %0 = vector.load %arg0[%c0, %c0_0] : memref<32x64xbf16, #tpu.memory_space<vmem>>, vector<32x64xbf16>
    %c0_1 = arith.constant 0 : index
    %c0_2 = arith.constant 0 : index
    %1 = vector.load %arg1[%c0_1, %c0_2] : memref<64x64xbf16, #tpu.memory_space<vmem>>, vector<64x64xbf16>
    %cst = arith.constant dense<0.000000e+00> : vector<32x64xf32>
    %2 = tpu.matmul %0, %1, %cst {dimension_numbers = #tpu.dot_dimension_numbers<[1], [0], [0], [1], [0, 0, 1, 1], [], []>} : vector<32x64xbf16>, vector<64x64xbf16>, vector<32x64xf32> -> vector<32x64xf32>
    %3 = vector.extract_strided_slice %2 {offsets = [0, 0], sizes = [16, 64], strides = [1, 1]} : vector<32x64xf32> to vector<16x64xf32>
    %c0_3 = arith.constant 0 : index
    %c0_4 = arith.constant 0 : index
    %c0_5 = arith.constant 0 : index
    %4 = vector.load %arg2[%c0_3, %c0_4, %c0_5] : memref<2x3x64xf32, #tpu.memory_space<vmem>>, vector<1x3x64xf32>
    %5 = vector.shape_cast %4 : vector<1x3x64xf32> to vector<3x64xf32>
    %6 = vector.extract_strided_slice %5 {offsets = [0, 0], sizes = [1, 64], strides = [1, 1]} : vector<3x64xf32> to vector<1x64xf32>
    %7 = vector.extract_strided_slice %5 {offsets = [1, 0], sizes = [1, 64], strides = [1, 1]} : vector<3x64xf32> to vector<1x64xf32>
    %8 = vector.extract_strided_slice %5 {offsets = [2, 0], sizes = [1, 64], strides = [1, 1]} : vector<3x64xf32> to vector<1x64xf32>
    %9 = vector.extract_strided_slice %3 {offsets = [0, 0], sizes = [1, 64], strides = [1, 1]} : vector<16x64xf32> to vector<1x64xf32>
    %10 = arith.mulf %9, %6 : vector<1x64xf32>
    %11 = vector.extract_strided_slice %3 {offsets = [1, 0], sizes = [1, 64], strides = [1, 1]} : vector<16x64xf32> to vector<1x64xf32>
    %12 = arith.mulf %11, %7 : vector<1x64xf32>
    %13 = arith.addf %10, %12 : vector<1x64xf32>
    %14 = vector.extract_strided_slice %3 {offsets = [2, 0], sizes = [1, 64], strides = [1, 1]} : vector<16x64xf32> to vector<1x64xf32>
    %15 = arith.mulf %14, %8 : vector<1x64xf32>
    %16 = arith.addf %13, %15 : vector<1x64xf32>
    %17 = vector.extract_strided_slice %3 {offsets = [3, 0], sizes = [1, 64], strides = [1, 1]} : vector<16x64xf32> to vector<1x64xf32>
    %18 = arith.addf %16, %17 : vector<1x64xf32>
    %19 = vector.extract_strided_slice %3 {offsets = [4, 0], sizes = [1, 64], strides = [1, 1]} : vector<16x64xf32> to vector<1x64xf32>
    %20 = arith.mulf %19, %6 : vector<1x64xf32>
    %21 = vector.extract_strided_slice %3 {offsets = [5, 0], sizes = [1, 64], strides = [1, 1]} : vector<16x64xf32> to vector<1x64xf32>
    %22 = arith.mulf %21, %7 : vector<1x64xf32>
    %23 = arith.addf %20, %22 : vector<1x64xf32>
    %24 = vector.extract_strided_slice %3 {offsets = [6, 0], sizes = [1, 64], strides = [1, 1]} : vector<16x64xf32> to vector<1x64xf32>
    %25 = arith.mulf %24, %8 : vector<1x64xf32>
    %26 = arith.addf %23, %25 : vector<1x64xf32>
    %27 = vector.extract_strided_slice %3 {offsets = [7, 0], sizes = [1, 64], strides = [1, 1]} : vector<16x64xf32> to vector<1x64xf32>
    %28 = arith.addf %26, %27 : vector<1x64xf32>
    %29 = vector.extract_strided_slice %3 {offsets = [8, 0], sizes = [1, 64], strides = [1, 1]} : vector<16x64xf32> to vector<1x64xf32>
    %30 = arith.mulf %29, %6 : vector<1x64xf32>
    %31 = vector.extract_strided_slice %3 {offsets = [9, 0], sizes = [1, 64], strides = [1, 1]} : vector<16x64xf32> to vector<1x64xf32>
    %32 = arith.mulf %31, %7 : vector<1x64xf32>
    %33 = arith.addf %30, %32 : vector<1x64xf32>
    %34 = vector.extract_strided_slice %3 {offsets = [10, 0], sizes = [1, 64], strides = [1, 1]} : vector<16x64xf32> to vector<1x64xf32>
    %35 = arith.mulf %34, %8 : vector<1x64xf32>
    %36 = arith.addf %33, %35 : vector<1x64xf32>
    %37 = vector.extract_strided_slice %3 {offsets = [11, 0], sizes = [1, 64], strides = [1, 1]} : vector<16x64xf32> to vector<1x64xf32>
    %38 = arith.addf %36, %37 : vector<1x64xf32>
    %39 = tpu.concatenate %18, %28, %38 in 0 : vector<1x64xf32>, vector<1x64xf32>, vector<1x64xf32> -> vector<3x64xf32>
    %c0_6 = arith.constant 0 : index
    %c0_7 = arith.constant 0 : index
    %c0_8 = arith.constant 0 : index
    %40 = vector.load %arg3[%c0_6, %c0_7, %c0_8] : memref<2x3x64xf32, #tpu.memory_space<vmem>>, vector<1x3x64xf32>
    %41 = vector.shape_cast %40 : vector<1x3x64xf32> to vector<3x64xf32>
    %42 = vector.shape_cast %39 : vector<3x64xf32> to vector<1x3x64xf32>
    tpu.vector_store %arg3[%c0_6, %c0_7, %c0_8], %42 {strides = array<i32>} : memref<2x3x64xf32, #tpu.memory_space<vmem>>, vector<1x3x64xf32>,
    %43 = vector.extract_strided_slice %2 {offsets = [16, 0], sizes = [16, 64], strides = [1, 1]} : vector<32x64xf32> to vector<16x64xf32>
    %c1 = arith.constant 1 : index
    %c0_9 = arith.constant 0 : index
    %c0_10 = arith.constant 0 : index
    %44 = vector.load %arg2[%c1, %c0_9, %c0_10] : memref<2x3x64xf32, #tpu.memory_space<vmem>>, vector<1x3x64xf32>
    %45 = vector.shape_cast %44 : vector<1x3x64xf32> to vector<3x64xf32>
    %46 = vector.extract_strided_slice %45 {offsets = [0, 0], sizes = [1, 64], strides = [1, 1]} : vector<3x64xf32> to vector<1x64xf32>
    %47 = vector.extract_strided_slice %45 {offsets = [1, 0], sizes = [1, 64], strides = [1, 1]} : vector<3x64xf32> to vector<1x64xf32>
    %48 = vector.extract_strided_slice %45 {offsets = [2, 0], sizes = [1, 64], strides = [1, 1]} : vector<3x64xf32> to vector<1x64xf32>
    %49 = vector.extract_strided_slice %43 {offsets = [0, 0], sizes = [1, 64], strides = [1, 1]} : vector<16x64xf32> to vector<1x64xf32>
    %50 = arith.mulf %49, %46 : vector<1x64xf32>
    %51 = vector.extract_strided_slice %43 {offsets = [1, 0], sizes = [1, 64], strides = [1, 1]} : vector<16x64xf32> to vector<1x64xf32>
    %52 = arith.mulf %51, %47 : vector<1x64xf32>
    %53 = arith.addf %50, %52 : vector<1x64xf32>
    %54 = vector.extract_strided_slice %43 {offsets = [2, 0], sizes = [1, 64], strides = [1, 1]} : vector<16x64xf32> to vector<1x64xf32>
    %55 = arith.mulf %54, %48 : vector<1x64xf32>
    %56 = arith.addf %53, %55 : vector<1x64xf32>
    %57 = vector.extract_strided_slice %43 {offsets = [3, 0], sizes = [1, 64], strides = [1, 1]} : vector<16x64xf32> to vector<1x64xf32>
    %58 = arith.addf %56, %57 : vector<1x64xf32>
    %59 = vector.extract_strided_slice %43 {offsets = [4, 0], sizes = [1, 64], strides = [1, 1]} : vector<16x64xf32> to vector<1x64xf32>
    %60 = arith.mulf %59, %46 : vector<1x64xf32>
    %61 = vector.extract_strided_slice %43 {offsets = [5, 0], sizes = [1, 64], strides = [1, 1]} : vector<16x64xf32> to vector<1x64xf32>
    %62 = arith.mulf %61, %47 : vector<1x64xf32>
    %63 = arith.addf %60, %62 : vector<1x64xf32>
    %64 = vector.extract_strided_slice %43 {offsets = [6, 0], sizes = [1, 64], strides = [1, 1]} : vector<16x64xf32> to vector<1x64xf32>
    %65 = arith.mulf %64, %48 : vector<1x64xf32>
    %66 = arith.addf %63, %65 : vector<1x64xf32>
    %67 = vector.extract_strided_slice %43 {offsets = [7, 0], sizes = [1, 64], strides = [1, 1]} : vector<16x64xf32> to vector<1x64xf32>
    %68 = arith.addf %66, %67 : vector<1x64xf32>
    %69 = vector.extract_strided_slice %43 {offsets = [8, 0], sizes = [1, 64], strides = [1, 1]} : vector<16x64xf32> to vector<1x64xf32>
    %70 = arith.mulf %69, %46 : vector<1x64xf32>
    %71 = vector.extract_strided_slice %43 {offsets = [9, 0], sizes = [1, 64], strides = [1, 1]} : vector<16x64xf32> to vector<1x64xf32>
    %72 = arith.mulf %71, %47 : vector<1x64xf32>
    %73 = arith.addf %70, %72 : vector<1x64xf32>
    %74 = vector.extract_strided_slice %43 {offsets = [10, 0], sizes = [1, 64], strides = [1, 1]} : vector<16x64xf32> to vector<1x64xf32>
    %75 = arith.mulf %74, %48 : vector<1x64xf32>
    %76 = arith.addf %73, %75 : vector<1x64xf32>
    %77 = vector.extract_strided_slice %43 {offsets = [11, 0], sizes = [1, 64], strides = [1, 1]} : vector<16x64xf32> to vector<1x64xf32>
    %78 = arith.addf %76, %77 : vector<1x64xf32>
    %79 = tpu.concatenate %58, %68, %78 in 0 : vector<1x64xf32>, vector<1x64xf32>, vector<1x64xf32> -> vector<3x64xf32>
    %c1_11 = arith.constant 1 : index
    %c0_12 = arith.constant 0 : index
    %c0_13 = arith.constant 0 : index
    %80 = vector.load %arg3[%c1_11, %c0_12, %c0_13] : memref<2x3x64xf32, #tpu.memory_space<vmem>>, vector<1x3x64xf32>
    %81 = vector.shape_cast %80 : vector<1x3x64xf32> to vector<3x64xf32>
    %82 = vector.shape_cast %79 : vector<3x64xf32> to vector<1x3x64xf32>
    tpu.vector_store %arg3[%c1_11, %c0_12, %c0_13], %82 {strides = array<i32>} : memref<2x3x64xf32, #tpu.memory_space<vmem>>, vector<1x3x64xf32>,
    return
  }
}

</mosaic_0001>

<llo_original>
// kernel: core.2
$region0: #{core.2}
  #allocation0 [shape = 'u32[]', space=smem, size = 0x4, offset = 0x4, fixed_abs, tag = 'smem constant byte address 0x4 - core index']
  #allocation1 [shape = 'u32[144,128]{1,0:T(1,128)}', space=vmem, size = 0x12000, scoped, tag = 'internal scratch']
  %s0 = inlined_call_operand.vmem [shape: bf16[2,512], index: 0, kind: input, shape index: {}]
  %s1 = inlined_call_operand.vmem [shape: f32[1,192], index: 1, kind: input, shape index: {}]
  %s2 = inlined_call_operand.vmem [shape: bf16[512,192], index: 2, kind: input, shape index: {}]
  %s3 = inlined_call_operand.vmem [shape: f32[1,156], index: 3, kind: input, shape index: {}]
  %s4 = inlined_call_operand.vmem [shape: bf16[512,156], index: 4, kind: input, shape index: {}]
  %s5 = inlined_call_operand.vmem [shape: f32[2,192], index: 5, kind: output, shape index: {0}]
  %s6 = inlined_call_operand.vmem [shape: f32[2,156], index: 6, kind: output, shape index: {1}]
  %7 = xla_tuple %s5, %s6
  %s8 = sld [smem:[#allocation0]]
  $region38: #{core.2} parent=0
    _
  %s10 = ssub.s32 1, %s8
  %s11 = scalar_select 0, %s10, %s8
  // Predicated region
  $region2: #{core.2} parent=0 // pred_check
    _
  $region3: #{core.2} parent=0 // pred_check_branch
    %13 = sbr.rel (0) target = $region5
  $region4: #{core.2} parent=0 // pred_region
    _
  $region5: #{core.2} parent=0 // pred_fallthru
    _
  // Predicated region
  $region6: #{core.2} parent=0 // pred_check
    _
  $region7: #{core.2} parent=0 // pred_check_branch
    %15 = sbr.rel (0) target = $region9
  $region8: #{core.2} parent=0 // pred_region
    _
  $region9: #{core.2} parent=0 // pred_fallthru
    _
  // Predicated region
  $region10: #{core.2} parent=0 // pred_check
    _
  $region11: #{core.2} parent=0 // pred_check_branch
    %17 = sbr.rel (0) target = $region13
  $region12: #{core.2} parent=0 // pred_region
    _
  $region13: #{core.2} parent=0 // pred_fallthru
    _
  // Predicated region
  $region14: #{core.2} parent=0 // pred_check
    _
  $region15: #{core.2} parent=0 // pred_check_branch
    %19 = sbr.rel (0) target = $region17
  $region16: #{core.2} parent=0 // pred_region
    _
  $region17: #{core.2} parent=0 // pred_fallthru
    _
  // Predicated region
  $region18: #{core.2} parent=0 // pred_check
    _
  $region19: #{core.2} parent=0 // pred_check_branch
    %21 = sbr.rel (0) target = $region21
  $region20: #{core.2} parent=0 // pred_region
    _
  $region21: #{core.2} parent=0 // pred_fallthru
    _
  %v22 = vld [vmem:[%s0] sm:$0xf]
  %v23 = vld [vmem:[%s1] sm:$0x3]
  %v24 = vld [vmem:[%s2] sm:$0xff]
  %v25 = vld [vmem:[%s2 + $0x8] sm:$0xff]
  %v26 = vld [vmem:[%s2 + $0x10] sm:$0xff]
  %v27 = vld [vmem:[%s2 + $0x18] sm:$0xff]
  %v28 = vld [vmem:[%s2 + $0x20] sm:$0xff]
  %v29 = vld [vmem:[%s2 + $0x28] sm:$0xff]
  %v30 = vld [vmem:[%s2 + $0x30] sm:$0xff]
  %v31 = vld [vmem:[%s2 + $0x38] sm:$0xff]
  %v32 = vld [vmem:[%s2 + $0x40] sm:$0xff]
  %v33 = vld [vmem:[%s2 + $0x48] sm:$0xff]
  %v34 = vld [vmem:[%s2 + $0x50] sm:$0xff]
  %v35 = vld [vmem:[%s2 + $0x58] sm:$0xff]
  %v36 = vld [vmem:[%s2 + $0x60] sm:$0xff]
  %v37 = vld [vmem:[%s2 + $0x68] sm:$0xff]
  %v38 = vld [vmem:[%s2 + $0x70] sm:$0xff]
  %v39 = vld [vmem:[%s2 + $0x78] sm:$0xff]
  %v40 = vld [vmem:[%s2 + $0x80] sm:$0xff]
  %v41 = vld [vmem:[%s2 + $0x88] sm:$0xff]
  %v42 = vld [vmem:[%s2 + $0x90] sm:$0xff]
  %v43 = vld [vmem:[%s2 + $0x98] sm:$0xff]
  %v44 = vld [vmem:[%s2 + $0xa0] sm:$0xff]
  %v45 = vld [vmem:[%s2 + $0xa8] sm:$0xff]
  %v46 = vld [vmem:[%s2 + $0xb0] sm:$0xff]
  %v47 = vld [vmem:[%s2 + $0xb8] sm:$0xff]
  %v48 = vld [vmem:[%s2 + $0xc0] sm:$0xff]
  %v49 = vld [vmem:[%s2 + $0xc8] sm:$0xff]
  %v50 = vld [vmem:[%s2 + $0xd0] sm:$0xff]
  %v51 = vld [vmem:[%s2 + $0xd8] sm:$0xff]
  %v52 = vld [vmem:[%s2 + $0xe0] sm:$0xff]
  %v53 = vld [vmem:[%s2 + $0xe8] sm:$0xff]
  %v54 = vld [vmem:[%s2 + $0xf0] sm:$0xff]
  %v55 = vld [vmem:[%s2 + $0xf8] sm:$0xff]
  %v56 = vld [vmem:[%s2 + $0x100] sm:$0xff]
  %v57 = vld [vmem:[%s2 + $0x108] sm:$0xff]
  %v58 = vld [vmem:[%s2 + $0x110] sm:$0xff]
  %v59 = vld [vmem:[%s2 + $0x118] sm:$0xff]
  %v60 = vld [vmem:[%s2 + $0x120] sm:$0xff]
  %v61 = vld [vmem:[%s2 + $0x128] sm:$0xff]
  %v62 = vld [vmem:[%s2 + $0x130] sm:$0xff]
  %v63 = vld [vmem:[%s2 + $0x138] sm:$0xff]
  %v64 = vld [vmem:[%s2 + $0x140] sm:$0xff]
  %v65 = vld [vmem:[%s2 + $0x148] sm:$0xff]
  %v66 = vld [vmem:[%s2 + $0x150] sm:$0xff]
  %v67 = vld [vmem:[%s2 + $0x158] sm:$0xff]
  %v68 = vld [vmem:[%s2 + $0x160] sm:$0xff]
  %v69 = vld [vmem:[%s2 + $0x168] sm:$0xff]
  %v70 = vld [vmem:[%s2 + $0x170] sm:$0xff]
  %v71 = vld [vmem:[%s2 + $0x178] sm:$0xff]
  %v72 = vld [vmem:[%s2 + $0x180] sm:$0xff]
  %v73 = vld [vmem:[%s2 + $0x188] sm:$0xff]
  %v74 = vld [vmem:[%s2 + $0x190] sm:$0xff]
  %v75 = vld [vmem:[%s2 + $0x198] sm:$0xff]
  %v76 = vld [vmem:[%s2 + $0x1a0] sm:$0xff]
  %v77 = vld [vmem:[%s2 + $0x1a8] sm:$0xff]
  %v78 = vld [vmem:[%s2 + $0x1b0] sm:$0xff]
  %v79 = vld [vmem:[%s2 + $0x1b8] sm:$0xff]
  %v80 = vld [vmem:[%s2 + $0x1c0] sm:$0xff]
  %v81 = vld [vmem:[%s2 + $0x1c8] sm:$0xff]
  %v82 = vld [vmem:[%s2 + $0x1d0] sm:$0xff]
  %v83 = vld [vmem:[%s2 + $0x1d8] sm:$0xff]
  %v84 = vld [vmem:[%s2 + $0x1e0] sm:$0xff]
  %v85 = vld [vmem:[%s2 + $0x1e8] sm:$0xff]
  %v86 = vld [vmem:[%s2 + $0x1f0] sm:$0xff]
  %v87 = vld [vmem:[%s2 + $0x1f8] sm:$0xff]
  %v90 = vunpack.c.l.s4 1966171168
  %v91 = vunpack.c.0.s8 %v90
  %v92 = vlaneseq
  %v93 = vshrl.u32 %v92, 7
  %v94 = vsub.s32 %v91, %v93
  %v95 = vrot.slane %v22, %v94
  %v96 = vcombine.high %v95, %v95
  %v98 = vunpack.c.l.s4 1966171168
  %v99 = vunpack.c.0.s8 %v98
  %v100 = vlaneseq
  %v101 = vshrl.u32 %v100, 7
  %v102 = vsub.s32 %v99, %v101
  %v103 = vrot.slane %v95, %v102
  %v105 = vunpack.c.l.s4 1966171168
  %v106 = vunpack.c.0.s8 %v105
  %v107 = vlaneseq
  %v108 = vshrl.u32 %v107, 7
  %v109 = vsub.s32 %v106, %v108
  %v110 = vrot.slane %v96, %v109
  %v111 = vcombine.high %v103, %v103
  %v112 = vcombine.high %v110, %v110
  %v181 = vunpack.c.l.b16 %v24
  %v182 = vunpack.c.h.b16 %v24
  %v183 = vunpack.c.l.b16 %v25
  %v184 = vunpack.c.h.b16 %v25
  %v185 = vunpack.c.l.b16 %v26
  %v186 = vunpack.c.h.b16 %v26
  %v187 = vunpack.c.l.b16 %v27
  %v188 = vunpack.c.h.b16 %v27
  %v189 = vunpack.c.l.b16 %v28
  %v190 = vunpack.c.h.b16 %v28
  %v191 = vunpack.c.l.b16 %v29
  %v192 = vunpack.c.h.b16 %v29
  %v193 = vunpack.c.l.b16 %v30
  %v194 = vunpack.c.h.b16 %v30
  %v195 = vunpack.c.l.b16 %v31
  %v196 = vunpack.c.h.b16 %v31
  %v197 = vunpack.c.l.b16 %v32
  %v198 = vunpack.c.h.b16 %v32
  %v199 = vunpack.c.l.b16 %v33
  %v200 = vunpack.c.h.b16 %v33
  %v201 = vunpack.c.l.b16 %v34
  %v202 = vunpack.c.h.b16 %v34
  %v203 = vunpack.c.l.b16 %v35
  %v204 = vunpack.c.h.b16 %v35
  %v205 = vunpack.c.l.b16 %v36
  %v206 = vunpack.c.h.b16 %v36
  %v207 = vunpack.c.l.b16 %v37
  %v208 = vunpack.c.h.b16 %v37
  %v209 = vunpack.c.l.b16 %v38
  %v210 = vunpack.c.h.b16 %v38
  %v211 = vunpack.c.l.b16 %v39
  %v212 = vunpack.c.h.b16 %v39
  %v213 = vunpack.c.l.b16 %v40
  %v214 = vunpack.c.h.b16 %v40
  %v215 = vunpack.c.l.b16 %v41
  %v216 = vunpack.c.h.b16 %v41
  %v217 = vunpack.c.l.b16 %v42
  %v218 = vunpack.c.h.b16 %v42
  %v219 = vunpack.c.l.b16 %v43
  %v220 = vunpack.c.h.b16 %v43
  %v221 = vunpack.c.l.b16 %v44
  %v222 = vunpack.c.h.b16 %v44
  %v223 = vunpack.c.l.b16 %v45
  %v224 = vunpack.c.h.b16 %v45
  %v225 = vunpack.c.l.b16 %v46
  %v226 = vunpack.c.h.b16 %v46
  %v227 = vunpack.c.l.b16 %v47
  %v228 = vunpack.c.h.b16 %v47
  %v229 = vunpack.c.l.b16 %v48
  %v230 = vunpack.c.h.b16 %v48
  %v231 = vunpack.c.l.b16 %v49
  %v232 = vunpack.c.h.b16 %v49
  %v233 = vunpack.c.l.b16 %v50
  %v234 = vunpack.c.h.b16 %v50
  %v235 = vunpack.c.l.b16 %v51
  %v236 = vunpack.c.h.b16 %v51
  %v237 = vunpack.c.l.b16 %v52
  %v238 = vunpack.c.h.b16 %v52
  %v239 = vunpack.c.l.b16 %v53
  %v240 = vunpack.c.h.b16 %v53
  %v241 = vunpack.c.l.b16 %v54
  %v242 = vunpack.c.h.b16 %v54
  %v243 = vunpack.c.l.b16 %v55
  %v244 = vunpack.c.h.b16 %v55
  %v245 = vunpack.c.l.b16 %v56
  %v246 = vunpack.c.h.b16 %v56
  %v247 = vunpack.c.l.b16 %v57
  %v248 = vunpack.c.h.b16 %v57
  %v249 = vunpack.c.l.b16 %v58
  %v250 = vunpack.c.h.b16 %v58
  %v251 = vunpack.c.l.b16 %v59
  %v252 = vunpack.c.h.b16 %v59
  %v253 = vunpack.c.l.b16 %v60
  %v254 = vunpack.c.h.b16 %v60
  %v255 = vunpack.c.l.b16 %v61
  %v256 = vunpack.c.h.b16 %v61
  %v257 = vunpack.c.l.b16 %v62
  %v258 = vunpack.c.h.b16 %v62
  %v259 = vunpack.c.l.b16 %v63
  %v260 = vunpack.c.h.b16 %v63
  %v261 = vunpack.c.l.b16 %v64
  %v262 = vunpack.c.h.b16 %v64
  %v263 = vunpack.c.l.b16 %v65
  %v264 = vunpack.c.h.b16 %v65
  %v265 = vunpack.c.l.b16 %v66
  %v266 = vunpack.c.h.b16 %v66
  %v267 = vunpack.c.l.b16 %v67
  %v268 = vunpack.c.h.b16 %v67
  %v269 = vunpack.c.l.b16 %v68
  %v270 = vunpack.c.h.b16 %v68
  %v271 = vunpack.c.l.b16 %v69
  %v272 = vunpack.c.h.b16 %v69
  %v273 = vunpack.c.l.b16 %v70
  %v274 = vunpack.c.h.b16 %v70
  %v275 = vunpack.c.l.b16 %v71
  %v276 = vunpack.c.h.b16 %v71
  %v277 = vunpack.c.l.b16 %v72
  %v278 = vunpack.c.h.b16 %v72
  %v279 = vunpack.c.l.b16 %v73
  %v280 = vunpack.c.h.b16 %v73
  %v281 = vunpack.c.l.b16 %v74
  %v282 = vunpack.c.h.b16 %v74
  %v283 = vunpack.c.l.b16 %v75
  %v284 = vunpack.c.h.b16 %v75
  %v285 = vunpack.c.l.b16 %v76
  %v286 = vunpack.c.h.b16 %v76
  %v287 = vunpack.c.l.b16 %v77
  %v288 = vunpack.c.h.b16 %v77
  %v289 = vunpack.c.l.b16 %v78
  %v290 = vunpack.c.h.b16 %v78
  %v291 = vunpack.c.l.b16 %v79
  %v292 = vunpack.c.h.b16 %v79
  %v293 = vunpack.c.l.b16 %v80
  %v294 = vunpack.c.h.b16 %v80
  %v295 = vunpack.c.l.b16 %v81
  %v296 = vunpack.c.h.b16 %v81
  %v297 = vunpack.c.l.b16 %v82
  %v298 = vunpack.c.h.b16 %v82
  %v299 = vunpack.c.l.b16 %v83
  %v300 = vunpack.c.h.b16 %v83
  %v301 = vunpack.c.l.b16 %v84
  %v302 = vunpack.c.h.b16 %v84
  %v303 = vunpack.c.l.b16 %v85
  %v304 = vunpack.c.h.b16 %v85
  %v305 = vunpack.c.l.b16 %v86
  %v306 = vunpack.c.h.b16 %v86
  %v307 = vunpack.c.l.b16 %v87
  %v308 = vunpack.c.h.b16 %v87
  %v309 = vpack.c.b16 %v183, %v181
  %v310 = vpack.c.b16 %v184, %v182
  %v311 = vpack.c.b16 %v187, %v185
  %v312 = vpack.c.b16 %v188, %v186
  %v313 = vpack.c.b16 %v191, %v189
  %v314 = vpack.c.b16 %v192, %v190
  %v315 = vpack.c.b16 %v195, %v193
  %v316 = vpack.c.b16 %v196, %v194
  %v317 = vpack.c.b16 %v199, %v197
  %v318 = vpack.c.b16 %v200, %v198
  %v319 = vpack.c.b16 %v203, %v201
  %v320 = vpack.c.b16 %v204, %v202
  %v321 = vpack.c.b16 %v207, %v205
  %v322 = vpack.c.b16 %v208, %v206
  %v323 = vpack.c.b16 %v211, %v209
  %v324 = vpack.c.b16 %v212, %v210
  %v325 = vpack.c.b16 %v215, %v213
  %v326 = vpack.c.b16 %v216, %v214
  %v327 = vpack.c.b16 %v219, %v217
  %v328 = vpack.c.b16 %v220, %v218
  %v329 = vpack.c.b16 %v223, %v221
  %v330 = vpack.c.b16 %v224, %v222
  %v331 = vpack.c.b16 %v227, %v225
  %v332 = vpack.c.b16 %v228, %v226
  %v333 = vpack.c.b16 %v231, %v229
  %v334 = vpack.c.b16 %v232, %v230
  %v335 = vpack.c.b16 %v235, %v233
  %v336 = vpack.c.b16 %v236, %v234
  %v337 = vpack.c.b16 %v239, %v237
  %v338 = vpack.c.b16 %v240, %v238
  %v339 = vpack.c.b16 %v243, %v241
  %v340 = vpack.c.b16 %v244, %v242
  %v341 = vpack.c.b16 %v247, %v245
  %v342 = vpack.c.b16 %v248, %v246
  %v343 = vpack.c.b16 %v251, %v249
  %v344 = vpack.c.b16 %v252, %v250
  %v345 = vpack.c.b16 %v255, %v253
  %v346 = vpack.c.b16 %v256, %v254
  %v347 = vpack.c.b16 %v259, %v257
  %v348 = vpack.c.b16 %v260, %v258
  %v349 = vpack.c.b16 %v263, %v261
  %v350 = vpack.c.b16 %v264, %v262
  %v351 = vpack.c.b16 %v267, %v265
  %v352 = vpack.c.b16 %v268, %v266
  %v353 = vpack.c.b16 %v271, %v269
  %v354 = vpack.c.b16 %v272, %v270
  %v355 = vpack.c.b16 %v275, %v273
  %v356 = vpack.c.b16 %v276, %v274
  %v357 = vpack.c.b16 %v279, %v277
  %v358 = vpack.c.b16 %v280, %v278
  %v359 = vpack.c.b16 %v283, %v281
  %v360 = vpack.c.b16 %v284, %v282
  %v361 = vpack.c.b16 %v287, %v285
  %v362 = vpack.c.b16 %v288, %v286
  %v363 = vpack.c.b16 %v291, %v289
  %v364 = vpack.c.b16 %v292, %v290
  %v365 = vpack.c.b16 %v295, %v293
  %v366 = vpack.c.b16 %v296, %v294
  %v367 = vpack.c.b16 %v299, %v297
  %v368 = vpack.c.b16 %v300, %v298
  %v369 = vpack.c.b16 %v303, %v301
  %v370 = vpack.c.b16 %v304, %v302
  %v371 = vpack.c.b16 %v307, %v305
  %v372 = vpack.c.b16 %v308, %v306
  %437 = vmatprep.subr.bf16.mxu0 %v324
  %438 = vmatpush1.bf16.msra.mxu0 %v323
  %439 = vmatprep.subr.bf16.mxu0 %v322
  %440 = vmatpush1.bf16.msra.mxu0 %v321
  %441 = vmatprep.subr.bf16.mxu0 %v320
  %442 = vmatpush1.bf16.msra.mxu0 %v319
  %443 = vmatprep.subr.bf16.mxu0 %v318
  %444 = vmatpush1.bf16.msra.mxu0 %v317
  %445 = vmatprep.subr.bf16.mxu0 %v316
  %446 = vmatpush1.bf16.msra.mxu0 %v315
  %447 = vmatprep.subr.bf16.mxu0 %v314
  %448 = vmatpush1.bf16.msra.mxu0 %v313
  %449 = vmatprep.subr.bf16.mxu0 %v312
  %450 = vmatpush1.bf16.msra.mxu0 %v311
  %451 = vmatprep.subr.bf16.mxu0 %v310
  %452 = vmatpush1.bf16.msra.mxu0 %v309
  %453 = vmatprep.subr.bf16.mxu0 %v340
  %454 = vmatpush2.bf16.msra.mxu0 %v339
  %455 = vmatprep.subr.bf16.mxu0 %v338
  %456 = vmatpush2.bf16.msra.mxu0 %v337
  %457 = vmatprep.subr.bf16.mxu0 %v336
  %458 = vmatpush2.bf16.msra.mxu0 %v335
  %459 = vmatprep.subr.bf16.mxu0 %v334
  %460 = vmatpush2.bf16.msra.mxu0 %v333
  %461 = vmatprep.subr.bf16.mxu0 %v332
  %462 = vmatpush2.bf16.msra.mxu0 %v331
  %463 = vmatprep.subr.bf16.mxu0 %v330
  %464 = vmatpush2.bf16.msra.mxu0 %v329
  %465 = vmatprep.subr.bf16.mxu0 %v328
  %466 = vmatpush2.bf16.msra.mxu0 %v327
  %467 = vmatprep.subr.bf16.mxu0 %v326
  %468 = vmatpush2.bf16.msra.mxu0 %v325
  %469 = vmatprep.mubr.bf16.mxu0 %v110
  %470 = vmatmul.mubr.bf16.gmra.mxu0 %v103
  %v471 = vpop.f32.mrf.mxu0
  %v472 = vadd.f32 0.0, %v471
  %v473 = vpop.f32.mrf.mxu0
  %v474 = vadd.f32 0.0, %v473
  %v475 = vpop.f32.mrf.mxu0
  %v476 = vpop.f32.mrf.mxu0
  %477 = vdwg.mxu0
  %478 = vmatprep.subr.bf16.mxu0 %v356
  %479 = vmatpush1.bf16.msra.mxu0 %v355
  %480 = vmatprep.subr.bf16.mxu0 %v354
  %481 = vmatpush1.bf16.msra.mxu0 %v353
  %482 = vmatprep.subr.bf16.mxu0 %v352
  %483 = vmatpush1.bf16.msra.mxu0 %v351
  %484 = vmatprep.subr.bf16.mxu0 %v350
  %485 = vmatpush1.bf16.msra.mxu0 %v349
  %486 = vmatprep.subr.bf16.mxu0 %v348
  %487 = vmatpush1.bf16.msra.mxu0 %v347
  %488 = vmatprep.subr.bf16.mxu0 %v346
  %489 = vmatpush1.bf16.msra.mxu0 %v345
  %490 = vmatprep.subr.bf16.mxu0 %v344
  %491 = vmatpush1.bf16.msra.mxu0 %v343
  %492 = vmatprep.subr.bf16.mxu0 %v342
  %493 = vmatpush1.bf16.msra.mxu0 %v341
  %494 = vmatprep.subr.bf16.mxu0 %v372
  %495 = vmatpush2.bf16.msra.mxu0 %v371
  %496 = vmatprep.subr.bf16.mxu0 %v370
  %497 = vmatpush2.bf16.msra.mxu0 %v369
  %498 = vmatprep.subr.bf16.mxu0 %v368
  %499 = vmatpush2.bf16.msra.mxu0 %v367
  %500 = vmatprep.subr.bf16.mxu0 %v366
  %501 = vmatpush2.bf16.msra.mxu0 %v365
  %502 = vmatprep.subr.bf16.mxu0 %v364
  %503 = vmatpush2.bf16.msra.mxu0 %v363
  %504 = vmatprep.subr.bf16.mxu0 %v362
  %505 = vmatpush2.bf16.msra.mxu0 %v361
  %506 = vmatprep.subr.bf16.mxu0 %v360
  %507 = vmatpush2.bf16.msra.mxu0 %v359
  %508 = vmatprep.subr.bf16.mxu0 %v358
  %509 = vmatpush2.bf16.msra.mxu0 %v357
  %510 = vmatprep.mubr.bf16.mxu0 %v112
  %511 = vmatmul.mubr.bf16.gmra.mxu0 %v111
  %v512 = vpop.f32.mrf.mxu0
  %v513 = vadd.f32 %v472, %v512
  %v514 = vpop.f32.mrf.mxu0
  %v515 = vadd.f32 %v474, %v514
  %v516 = vpop.f32.mrf.mxu0
  %v517 = vpop.f32.mrf.mxu0
  %518 = vdwg.mxu0
  %v520 = vlaneseq
  %v521 = vshrl.u32 %v520, 7
  %v522 = vsub.s32 0, %v521
  %v523 = vrot.slane %v23, %v522
  %v524 = vlaneseq
  %v525 = vshrl.u32 %v524, 7
  %v526 = vsub.s32 1, %v525
  %v527 = vrot.slane %v23, %v526
  %v530 = vadd.f32 %v523, %v513
  %v531 = vadd.f32 %v527, %v515
  %v534 = vcombine.low %v530, %v531
  %v536 = vunpack.c.l.s4 1983009808
  %v537 = vunpack.c.0.s8 %v536
  %v538 = vlaneseq
  %v539 = vshrl.u32 %v538, 7
  %v540 = vsub.s32 %v537, %v539
  %v541 = vrot.slane %v534, %v540
  %vm543 = vcmask 1041408
  %vm544 = vcmask 519170
  %vm545 = vmor %vm544, %vm543
  %546 = vst.msk [vmem:[%s5] sm:$0xf] %vm545, %v541
  %v547 = vld [vmem:[%s3] sm:$0x3]
  %v548 = vld [vmem:[%s4] sm:$0xff]
  %v549 = vld [vmem:[%s4 + $0x8] sm:$0xff]
  %v550 = vld [vmem:[%s4 + $0x10] sm:$0xff]
  %v551 = vld [vmem:[%s4 + $0x18] sm:$0xff]
  %v552 = vld [vmem:[%s4 + $0x20] sm:$0xff]
  %v553 = vld [vmem:[%s4 + $0x28] sm:$0xff]
  %v554 = vld [vmem:[%s4 + $0x30] sm:$0xff]
  %v555 = vld [vmem:[%s4 + $0x38] sm:$0xff]
  %v556 = vld [vmem:[%s4 + $0x40] sm:$0xff]
  %v557 = vld [vmem:[%s4 + $0x48] sm:$0xff]
  %v558 = vld [vmem:[%s4 + $0x50] sm:$0xff]
  %v559 = vld [vmem:[%s4 + $0x58] sm:$0xff]
  %v560 = vld [vmem:[%s4 + $0x60] sm:$0xff]
  %v561 = vld [vmem:[%s4 + $0x68] sm:$0xff]
  %v562 = vld [vmem:[%s4 + $0x70] sm:$0xff]
  %v563 = vld [vmem:[%s4 + $0x78] sm:$0xff]
  %v564 = vld [vmem:[%s4 + $0x80] sm:$0xff]
  %v565 = vld [vmem:[%s4 + $0x88] sm:$0xff]
  %v566 = vld [vmem:[%s4 + $0x90] sm:$0xff]
  %v567 = vld [vmem:[%s4 + $0x98] sm:$0xff]
  %v568 = vld [vmem:[%s4 + $0xa0] sm:$0xff]
  %v569 = vld [vmem:[%s4 + $0xa8] sm:$0xff]
  %v570 = vld [vmem:[%s4 + $0xb0] sm:$0xff]
  %v571 = vld [vmem:[%s4 + $0xb8] sm:$0xff]
  %v572 = vld [vmem:[%s4 + $0xc0] sm:$0xff]
  %v573 = vld [vmem:[%s4 + $0xc8] sm:$0xff]
  %v574 = vld [vmem:[%s4 + $0xd0] sm:$0xff]
  %v575 = vld [vmem:[%s4 + $0xd8] sm:$0xff]
  %v576 = vld [vmem:[%s4 + $0xe0] sm:$0xff]
  %v577 = vld [vmem:[%s4 + $0xe8] sm:$0xff]
  %v578 = vld [vmem:[%s4 + $0xf0] sm:$0xff]
  %v579 = vld [vmem:[%s4 + $0xf8] sm:$0xff]
  %v580 = vld [vmem:[%s4 + $0x100] sm:$0xff]
  %v581 = vld [vmem:[%s4 + $0x108] sm:$0xff]
  %v582 = vld [vmem:[%s4 + $0x110] sm:$0xff]
  %v583 = vld [vmem:[%s4 + $0x118] sm:$0xff]
  %v584 = vld [vmem:[%s4 + $0x120] sm:$0xff]
  %v585 = vld [vmem:[%s4 + $0x128] sm:$0xff]
  %v586 = vld [vmem:[%s4 + $0x130] sm:$0xff]
  %v587 = vld [vmem:[%s4 + $0x138] sm:$0xff]
  %v588 = vld [vmem:[%s4 + $0x140] sm:$0xff]
  %v589 = vld [vmem:[%s4 + $0x148] sm:$0xff]
  %v590 = vld [vmem:[%s4 + $0x150] sm:$0xff]
  %v591 = vld [vmem:[%s4 + $0x158] sm:$0xff]
  %v592 = vld [vmem:[%s4 + $0x160] sm:$0xff]
  %v593 = vld [vmem:[%s4 + $0x168] sm:$0xff]
  %v594 = vld [vmem:[%s4 + $0x170] sm:$0xff]
  %v595 = vld [vmem:[%s4 + $0x178] sm:$0xff]
  %v596 = vld [vmem:[%s4 + $0x180] sm:$0xff]
  %v597 = vld [vmem:[%s4 + $0x188] sm:$0xff]
  %v598 = vld [vmem:[%s4 + $0x190] sm:$0xff]
  %v599 = vld [vmem:[%s4 + $0x198] sm:$0xff]
  %v600 = vld [vmem:[%s4 + $0x1a0] sm:$0xff]
  %v601 = vld [vmem:[%s4 + $0x1a8] sm:$0xff]
  %v602 = vld [vmem:[%s4 + $0x1b0] sm:$0xff]
  %v603 = vld [vmem:[%s4 + $0x1b8] sm:$0xff]
  %v604 = vld [vmem:[%s4 + $0x1c0] sm:$0xff]
  %v605 = vld [vmem:[%s4 + $0x1c8] sm:$0xff]
  %v606 = vld [vmem:[%s4 + $0x1d0] sm:$0xff]
  %v607 = vld [vmem:[%s4 + $0x1d8] sm:$0xff]
  %v608 = vld [vmem:[%s4 + $0x1e0] sm:$0xff]
  %v609 = vld [vmem:[%s4 + $0x1e8] sm:$0xff]
  %v610 = vld [vmem:[%s4 + $0x1f0] sm:$0xff]
  %v611 = vld [vmem:[%s4 + $0x1f8] sm:$0xff]
  %v676 = vunpack.c.l.b16 %v548
  %v677 = vunpack.c.h.b16 %v548
  %v678 = vunpack.c.l.b16 %v549
  %v679 = vunpack.c.h.b16 %v549
  %v680 = vunpack.c.l.b16 %v550
  %v681 = vunpack.c.h.b16 %v550
  %v682 = vunpack.c.l.b16 %v551
  %v683 = vunpack.c.h.b16 %v551
  %v684 = vunpack.c.l.b16 %v552
  %v685 = vunpack.c.h.b16 %v552
  %v686 = vunpack.c.l.b16 %v553
  %v687 = vunpack.c.h.b16 %v553
  %v688 = vunpack.c.l.b16 %v554
  %v689 = vunpack.c.h.b16 %v554
  %v690 = vunpack.c.l.b16 %v555
  %v691 = vunpack.c.h.b16 %v555
  %v692 = vunpack.c.l.b16 %v556
  %v693 = vunpack.c.h.b16 %v556
  %v694 = vunpack.c.l.b16 %v557
  %v695 = vunpack.c.h.b16 %v557
  %v696 = vunpack.c.l.b16 %v558
  %v697 = vunpack.c.h.b16 %v558
  %v698 = vunpack.c.l.b16 %v559
  %v699 = vunpack.c.h.b16 %v559
  %v700 = vunpack.c.l.b16 %v560
  %v701 = vunpack.c.h.b16 %v560
  %v702 = vunpack.c.l.b16 %v561
  %v703 = vunpack.c.h.b16 %v561
  %v704 = vunpack.c.l.b16 %v562
  %v705 = vunpack.c.h.b16 %v562
  %v706 = vunpack.c.l.b16 %v563
  %v707 = vunpack.c.h.b16 %v563
  %v708 = vunpack.c.l.b16 %v564
  %v709 = vunpack.c.h.b16 %v564
  %v710 = vunpack.c.l.b16 %v565
  %v711 = vunpack.c.h.b16 %v565
  %v712 = vunpack.c.l.b16 %v566
  %v713 = vunpack.c.h.b16 %v566
  %v714 = vunpack.c.l.b16 %v567
  %v715 = vunpack.c.h.b16 %v567
  %v716 = vunpack.c.l.b16 %v568
  %v717 = vunpack.c.h.b16 %v568
  %v718 = vunpack.c.l.b16 %v569
  %v719 = vunpack.c.h.b16 %v569
  %v720 = vunpack.c.l.b16 %v570
  %v721 = vunpack.c.h.b16 %v570
  %v722 = vunpack.c.l.b16 %v571
  %v723 = vunpack.c.h.b16 %v571
  %v724 = vunpack.c.l.b16 %v572
  %v725 = vunpack.c.h.b16 %v572
  %v726 = vunpack.c.l.b16 %v573
  %v727 = vunpack.c.h.b16 %v573
  %v728 = vunpack.c.l.b16 %v574
  %v729 = vunpack.c.h.b16 %v574
  %v730 = vunpack.c.l.b16 %v575
  %v731 = vunpack.c.h.b16 %v575
  %v732 = vunpack.c.l.b16 %v576
  %v733 = vunpack.c.h.b16 %v576
  %v734 = vunpack.c.l.b16 %v577
  %v735 = vunpack.c.h.b16 %v577
  %v736 = vunpack.c.l.b16 %v578
  %v737 = vunpack.c.h.b16 %v578
  %v738 = vunpack.c.l.b16 %v579
  %v739 = vunpack.c.h.b16 %v579
  %v740 = vunpack.c.l.b16 %v580
  %v741 = vunpack.c.h.b16 %v580
  %v742 = vunpack.c.l.b16 %v581
  %v743 = vunpack.c.h.b16 %v581
  %v744 = vunpack.c.l.b16 %v582
  %v745 = vunpack.c.h.b16 %v582
  %v746 = vunpack.c.l.b16 %v583
  %v747 = vunpack.c.h.b16 %v583
  %v748 = vunpack.c.l.b16 %v584
  %v749 = vunpack.c.h.b16 %v584
  %v750 = vunpack.c.l.b16 %v585
  %v751 = vunpack.c.h.b16 %v585
  %v752 = vunpack.c.l.b16 %v586
  %v753 = vunpack.c.h.b16 %v586
  %v754 = vunpack.c.l.b16 %v587
  %v755 = vunpack.c.h.b16 %v587
  %v756 = vunpack.c.l.b16 %v588
  %v757 = vunpack.c.h.b16 %v588
  %v758 = vunpack.c.l.b16 %v589
  %v759 = vunpack.c.h.b16 %v589
  %v760 = vunpack.c.l.b16 %v590
  %v761 = vunpack.c.h.b16 %v590
  %v762 = vunpack.c.l.b16 %v591
  %v763 = vunpack.c.h.b16 %v591
  %v764 = vunpack.c.l.b16 %v592
  %v765 = vunpack.c.h.b16 %v592
  %v766 = vunpack.c.l.b16 %v593
  %v767 = vunpack.c.h.b16 %v593
  %v768 = vunpack.c.l.b16 %v594
  %v769 = vunpack.c.h.b16 %v594
  %v770 = vunpack.c.l.b16 %v595
  %v771 = vunpack.c.h.b16 %v595
  %v772 = vunpack.c.l.b16 %v596
  %v773 = vunpack.c.h.b16 %v596
  %v774 = vunpack.c.l.b16 %v597
  %v775 = vunpack.c.h.b16 %v597
  %v776 = vunpack.c.l.b16 %v598
  %v777 = vunpack.c.h.b16 %v598
  %v778 = vunpack.c.l.b16 %v599
  %v779 = vunpack.c.h.b16 %v599
  %v780 = vunpack.c.l.b16 %v600
  %v781 = vunpack.c.h.b16 %v600
  %v782 = vunpack.c.l.b16 %v601
  %v783 = vunpack.c.h.b16 %v601
  %v784 = vunpack.c.l.b16 %v602
  %v785 = vunpack.c.h.b16 %v602
  %v786 = vunpack.c.l.b16 %v603
  %v787 = vunpack.c.h.b16 %v603
  %v788 = vunpack.c.l.b16 %v604
  %v789 = vunpack.c.h.b16 %v604
  %v790 = vunpack.c.l.b16 %v605
  %v791 = vunpack.c.h.b16 %v605
  %v792 = vunpack.c.l.b16 %v606
  %v793 = vunpack.c.h.b16 %v606
  %v794 = vunpack.c.l.b16 %v607
  %v795 = vunpack.c.h.b16 %v607
  %v796 = vunpack.c.l.b16 %v608
  %v797 = vunpack.c.h.b16 %v608
  %v798 = vunpack.c.l.b16 %v609
  %v799 = vunpack.c.h.b16 %v609
  %v800 = vunpack.c.l.b16 %v610
  %v801 = vunpack.c.h.b16 %v610
  %v802 = vunpack.c.l.b16 %v611
  %v803 = vunpack.c.h.b16 %v611
  %v804 = vpack.c.b16 %v678, %v676
  %v805 = vpack.c.b16 %v679, %v677
  %v806 = vpack.c.b16 %v682, %v680
  %v807 = vpack.c.b16 %v683, %v681
  %v808 = vpack.c.b16 %v686, %v684
  %v809 = vpack.c.b16 %v687, %v685
  %v810 = vpack.c.b16 %v690, %v688
  %v811 = vpack.c.b16 %v691, %v689
  %v812 = vpack.c.b16 %v694, %v692
  %v813 = vpack.c.b16 %v695, %v693
  %v814 = vpack.c.b16 %v698, %v696
  %v815 = vpack.c.b16 %v699, %v697
  %v816 = vpack.c.b16 %v702, %v700
  %v817 = vpack.c.b16 %v703, %v701
  %v818 = vpack.c.b16 %v706, %v704
  %v819 = vpack.c.b16 %v707, %v705
  %v820 = vpack.c.b16 %v710, %v708
  %v821 = vpack.c.b16 %v711, %v709
  %v822 = vpack.c.b16 %v714, %v712
  %v823 = vpack.c.b16 %v715, %v713
  %v824 = vpack.c.b16 %v718, %v716
  %v825 = vpack.c.b16 %v719, %v717
  %v826 = vpack.c.b16 %v722, %v720
  %v827 = vpack.c.b16 %v723, %v721
  %v828 = vpack.c.b16 %v726, %v724
  %v829 = vpack.c.b16 %v727, %v725
  %v830 = vpack.c.b16 %v730, %v728
  %v831 = vpack.c.b16 %v731, %v729
  %v832 = vpack.c.b16 %v734, %v732
  %v833 = vpack.c.b16 %v735, %v733
  %v834 = vpack.c.b16 %v738, %v736
  %v835 = vpack.c.b16 %v739, %v737
  %v836 = vpack.c.b16 %v742, %v740
  %v837 = vpack.c.b16 %v743, %v741
  %v838 = vpack.c.b16 %v746, %v744
  %v839 = vpack.c.b16 %v747, %v745
  %v840 = vpack.c.b16 %v750, %v748
  %v841 = vpack.c.b16 %v751, %v749
  %v842 = vpack.c.b16 %v754, %v752
  %v843 = vpack.c.b16 %v755, %v753
  %v844 = vpack.c.b16 %v758, %v756
  %v845 = vpack.c.b16 %v759, %v757
  %v846 = vpack.c.b16 %v762, %v760
  %v847 = vpack.c.b16 %v763, %v761
  %v848 = vpack.c.b16 %v766, %v764
  %v849 = vpack.c.b16 %v767, %v765
  %v850 = vpack.c.b16 %v770, %v768
  %v851 = vpack.c.b16 %v771, %v769
  %v852 = vpack.c.b16 %v774, %v772
  %v853 = vpack.c.b16 %v775, %v773
  %v854 = vpack.c.b16 %v778, %v776
  %v855 = vpack.c.b16 %v779, %v777
  %v856 = vpack.c.b16 %v782, %v780
  %v857 = vpack.c.b16 %v783, %v781
  %v858 = vpack.c.b16 %v786, %v784
  %v859 = vpack.c.b16 %v787, %v785
  %v860 = vpack.c.b16 %v790, %v788
  %v861 = vpack.c.b16 %v791, %v789
  %v862 = vpack.c.b16 %v794, %v792
  %v863 = vpack.c.b16 %v795, %v793
  %v864 = vpack.c.b16 %v798, %v796
  %v865 = vpack.c.b16 %v799, %v797
  %v866 = vpack.c.b16 %v802, %v800
  %v867 = vpack.c.b16 %v803, %v801
  %932 = vmatprep.subr.bf16.mxu0 %v819
  %933 = vmatpush1.bf16.msra.mxu0 %v818
  %934 = vmatprep.subr.bf16.mxu0 %v817
  %935 = vmatpush1.bf16.msra.mxu0 %v816
  %936 = vmatprep.subr.bf16.mxu0 %v815
  %937 = vmatpush1.bf16.msra.mxu0 %v814
  %938 = vmatprep.subr.bf16.mxu0 %v813
  %939 = vmatpush1.bf16.msra.mxu0 %v812
  %940 = vmatprep.subr.bf16.mxu0 %v811
  %941 = vmatpush1.bf16.msra.mxu0 %v810
  %942 = vmatprep.subr.bf16.mxu0 %v809
  %943 = vmatpush1.bf16.msra.mxu0 %v808
  %944 = vmatprep.subr.bf16.mxu0 %v807
  %945 = vmatpush1.bf16.msra.mxu0 %v806
  %946 = vmatprep.subr.bf16.mxu0 %v805
  %947 = vmatpush1.bf16.msra.mxu0 %v804
  %948 = vmatprep.subr.bf16.mxu0 %v835
  %949 = vmatpush2.bf16.msra.mxu0 %v834
  %950 = vmatprep.subr.bf16.mxu0 %v833
  %951 = vmatpush2.bf16.msra.mxu0 %v832
  %952 = vmatprep.subr.bf16.mxu0 %v831
  %953 = vmatpush2.bf16.msra.mxu0 %v830
  %954 = vmatprep.subr.bf16.mxu0 %v829
  %955 = vmatpush2.bf16.msra.mxu0 %v828
  %956 = vmatprep.subr.bf16.mxu0 %v827
  %957 = vmatpush2.bf16.msra.mxu0 %v826
  %958 = vmatprep.subr.bf16.mxu0 %v825
  %959 = vmatpush2.bf16.msra.mxu0 %v824
  %960 = vmatprep.subr.bf16.mxu0 %v823
  %961 = vmatpush2.bf16.msra.mxu0 %v822
  %962 = vmatprep.subr.bf16.mxu0 %v821
  %963 = vmatpush2.bf16.msra.mxu0 %v820
  %964 = vmatprep.mubr.bf16.mxu0 %v110
  %965 = vmatmul.mubr.bf16.gmra.mxu0 %v103
  %v966 = vpop.f32.mrf.mxu0
  %v967 = vadd.f32 0.0, %v966
  %v968 = vpop.f32.mrf.mxu0
  %v969 = vadd.f32 0.0, %v968
  %v970 = vpop.f32.mrf.mxu0
  %v971 = vpop.f32.mrf.mxu0
  %972 = vdwg.mxu0
  %973 = vmatprep.subr.bf16.mxu0 %v851
  %974 = vmatpush1.bf16.msra.mxu0 %v850
  %975 = vmatprep.subr.bf16.mxu0 %v849
  %976 = vmatpush1.bf16.msra.mxu0 %v848
  %977 = vmatprep.subr.bf16.mxu0 %v847
  %978 = vmatpush1.bf16.msra.mxu0 %v846
  %979 = vmatprep.subr.bf16.mxu0 %v845
  %980 = vmatpush1.bf16.msra.mxu0 %v844
  %981 = vmatprep.subr.bf16.mxu0 %v843
  %982 = vmatpush1.bf16.msra.mxu0 %v842
  %983 = vmatprep.subr.bf16.mxu0 %v841
  %984 = vmatpush1.bf16.msra.mxu0 %v840
  %985 = vmatprep.subr.bf16.mxu0 %v839
  %986 = vmatpush1.bf16.msra.mxu0 %v838
  %987 = vmatprep.subr.bf16.mxu0 %v837
  %988 = vmatpush1.bf16.msra.mxu0 %v836
  %989 = vmatprep.subr.bf16.mxu0 %v867
  %990 = vmatpush2.bf16.msra.mxu0 %v866
  %991 = vmatprep.subr.bf16.mxu0 %v865
  %992 = vmatpush2.bf16.msra.mxu0 %v864
  %993 = vmatprep.subr.bf16.mxu0 %v863
  %994 = vmatpush2.bf16.msra.mxu0 %v862
  %995 = vmatprep.subr.bf16.mxu0 %v861
  %996 = vmatpush2.bf16.msra.mxu0 %v860
  %997 = vmatprep.subr.bf16.mxu0 %v859
  %998 = vmatpush2.bf16.msra.mxu0 %v858
  %999 = vmatprep.subr.bf16.mxu0 %v857
  %1000 = vmatpush2.bf16.msra.mxu0 %v856
  %1001 = vmatprep.subr.bf16.mxu0 %v855
  %1002 = vmatpush2.bf16.msra.mxu0 %v854
  %1003 = vmatprep.subr.bf16.mxu0 %v853
  %1004 = vmatpush2.bf16.msra.mxu0 %v852
  %1005 = vmatprep.mubr.bf16.mxu0 %v112
  %1006 = vmatmul.mubr.bf16.gmra.mxu0 %v111
  %v1007 = vpop.f32.mrf.mxu0
  %v1008 = vadd.f32 %v967, %v1007
  %v1009 = vpop.f32.mrf.mxu0
  %v1010 = vadd.f32 %v969, %v1009
  %v1011 = vpop.f32.mrf.mxu0
  %v1012 = vpop.f32.mrf.mxu0
  %1013 = vdwg.mxu0
  %v1015 = vlaneseq
  %v1016 = vshrl.u32 %v1015, 7
  %v1017 = vsub.s32 0, %v1016
  %v1018 = vrot.slane %v547, %v1017
  %v1019 = vlaneseq
  %v1020 = vshrl.u32 %v1019, 7
  %v1021 = vsub.s32 1, %v1020
  %v1022 = vrot.slane %v547, %v1021
  %v1025 = vadd.f32 %v1018, %v1008
  %v1026 = vadd.f32 %v1022, %v1010
  %v1029 = vcombine.low %v1025, %v1026
  %v1031 = vunpack.c.l.s4 1983009808
  %v1032 = vunpack.c.0.s8 %v1031
  %v1033 = vlaneseq
  %v1034 = vshrl.u32 %v1033, 7
  %v1035 = vsub.s32 %v1032, %v1034
  %v1036 = vrot.slane %v1029, %v1035
  %vm1038 = vcmask 224258
  %vm1039 = vmor %vm1038, %vm543
  %1040 = vst.msk [vmem:[%s6] sm:$0xf] %vm1039, %v1036
  // Predicated region
  $region22: #{core.2} parent=0 // pred_check
    _
  $region23: #{core.2} parent=0 // pred_check_branch
    %1042 = sbr.rel (0) target = $region25
  $region24: #{core.2} parent=0 // pred_region
    _
  $region25: #{core.2} parent=0 // pred_fallthru
    _
  // Predicated region
  $region26: #{core.2} parent=0 // pred_check
    _
  $region27: #{core.2} parent=0 // pred_check_branch
    %1044 = sbr.rel (0) target = $region29
  $region28: #{core.2} parent=0 // pred_region
    _
  $region29: #{core.2} parent=0 // pred_fallthru
    _
  // Predicated region
  $region30: #{core.2} parent=0 // pred_check
    _
  $region31: #{core.2} parent=0 // pred_check_branch
    %1046 = sbr.rel (0) target = $region33
  $region32: #{core.2} parent=0 // pred_region
    _
  $region33: #{core.2} parent=0 // pred_fallthru
    _
  // Predicated region
  $region34: #{core.2} parent=0 // pred_check
    _
  $region35: #{core.2} parent=0 // pred_check_branch
    %1048 = sbr.rel (0) target = $region37
  $region36: #{core.2} parent=0 // pred_region
    _
  $region37: #{core.2} parent=0 // pred_fallthru
    _

// kernel: core.3
$region0: #{core.3}
  #allocation0 [shape = 'u32[]', space=smem, size = 0x4, offset = 0x4, fixed_abs, tag = 'smem constant byte address 0x4 - core index']
  #allocation1 [shape = 'u32[144,128]{1,0:T(1,128)}', space=vmem, size = 0x12000, scoped, tag = 'internal scratch']
  %s0 = inlined_call_operand.vmem [shape: bf16[32,64], index: 0, kind: input, shape index: {}]
  %s1 = inlined_call_operand.vmem [shape: bf16[64,64], index: 1, kind: input, shape index: {}]
  %s2 = inlined_call_operand.vmem [shape: f32[2,3,64], index: 2, kind: input, shape index: {}]
  %s3 = inlined_call_operand.vmem [shape: f32[2,3,64], index: 3, kind: output, shape index: {}]
  %s4 = sld [smem:[#allocation0]]
  $region22: #{core.3} parent=0
    _
  %s6 = ssub.s32 1, %s4
  %s7 = scalar_select 0, %s6, %s4
  // Predicated region
  $region2: #{core.3} parent=0 // pred_check
    _
  $region3: #{core.3} parent=0 // pred_check_branch
    %9 = sbr.rel (0) target = $region5
  $region4: #{core.3} parent=0 // pred_region
    _
  $region5: #{core.3} parent=0 // pred_fallthru
    _
  // Predicated region
  $region6: #{core.3} parent=0 // pred_check
    _
  $region7: #{core.3} parent=0 // pred_check_branch
    %11 = sbr.rel (0) target = $region9
  $region8: #{core.3} parent=0 // pred_region
    _
  $region9: #{core.3} parent=0 // pred_fallthru
    _
  // Predicated region
  $region10: #{core.3} parent=0 // pred_check
    _
  $region11: #{core.3} parent=0 // pred_check_branch
    %13 = sbr.rel (0) target = $region13
  $region12: #{core.3} parent=0 // pred_region
    _
  $region13: #{core.3} parent=0 // pred_fallthru
    _
  %v15 = vld [vmem:[%s0] sm:$0xf]
  %v16 = vld [vmem:[%s0 + $0x4] sm:$0xf]
  %v17 = vld [vmem:[%s0 + $0x8] sm:$0xf]
  %v18 = vld [vmem:[%s0 + $0xc] sm:$0xf]
  %v19 = vld [vmem:[%s1] sm:$0xf]
  %v20 = vld [vmem:[%s1 + $0x4] sm:$0xf]
  %v21 = vld [vmem:[%s1 + $0x8] sm:$0xf]
  %v22 = vld [vmem:[%s1 + $0xc] sm:$0xf]
  %v23 = vld [vmem:[%s1 + $0x10] sm:$0xf]
  %v24 = vld [vmem:[%s1 + $0x14] sm:$0xf]
  %v25 = vld [vmem:[%s1 + $0x18] sm:$0xf]
  %v26 = vld [vmem:[%s1 + $0x1c] sm:$0xf]
  %v31 = vunpack.c.l.b16 %v15
  %v32 = vunpack.c.l.b16 %v16
  %v33 = vunpack.c.l.b16 %v17
  %v34 = vunpack.c.l.b16 %v18
  %v35 = vpack.c.b16 %v32, %v31
  %v36 = vpack.c.b16 %v34, %v33
  %v45 = vunpack.c.l.b16 %v19
  %v46 = vunpack.c.l.b16 %v20
  %v47 = vunpack.c.l.b16 %v21
  %v48 = vunpack.c.l.b16 %v22
  %v49 = vunpack.c.l.b16 %v23
  %v50 = vunpack.c.l.b16 %v24
  %v51 = vunpack.c.l.b16 %v25
  %v52 = vunpack.c.l.b16 %v26
  %v53 = vpack.c.b16 %v46, %v45
  %v54 = vpack.c.b16 %v48, %v47
  %v55 = vpack.c.b16 %v50, %v49
  %v56 = vpack.c.b16 %v52, %v51
  %vm61 = vcmask 523264
  %v63 = vsel %vm61, %v35, 0
  %v66 = vsel %vm61, %v36, 0
  %68 = vmatprep.subr.bf16.mxu0 0
  %69 = vmatpush1.bf16.msra.mxu0 0
  %70 = vmatprep.subr.bf16.mxu0 0
  %71 = vmatpush1.bf16.msra.mxu0 0
  %72 = vmatprep.subr.bf16.mxu0 0
  %73 = vmatpush1.bf16.msra.mxu0 0
  %74 = vmatprep.subr.bf16.mxu0 0
  %75 = vmatpush1.bf16.msra.mxu0 0
  %76 = vmatprep.subr.bf16.mxu0 0
  %77 = vmatpush1.bf16.msra.mxu0 %v56
  %78 = vmatprep.subr.bf16.mxu0 0
  %79 = vmatpush1.bf16.msra.mxu0 %v55
  %80 = vmatprep.subr.bf16.mxu0 0
  %81 = vmatpush1.bf16.msra.mxu0 %v54
  %82 = vmatprep.subr.bf16.mxu0 0
  %83 = vmatpush1.bf16.msra.mxu0 %v53
  %84 = vmatprep.subr.bf16.mxu0 0
  %85 = vmatpush2.bf16.msra.mxu0 0
  %86 = vmatprep.subr.bf16.mxu0 0
  %87 = vmatpush2.bf16.msra.mxu0 0
  %88 = vmatprep.subr.bf16.mxu0 0
  %89 = vmatpush2.bf16.msra.mxu0 0
  %90 = vmatprep.subr.bf16.mxu0 0
  %91 = vmatpush2.bf16.msra.mxu0 0
  %92 = vmatprep.subr.bf16.mxu0 0
  %93 = vmatpush2.bf16.msra.mxu0 0
  %94 = vmatprep.subr.bf16.mxu0 0
  %95 = vmatpush2.bf16.msra.mxu0 0
  %96 = vmatprep.subr.bf16.mxu0 0
  %97 = vmatpush2.bf16.msra.mxu0 0
  %98 = vmatprep.subr.bf16.mxu0 0
  %99 = vmatpush2.bf16.msra.mxu0 0
  %100 = vmatprep.mubr.bf16.mxu0 0
  %101 = vmatmul.mubr.bf16.gmra.mxu0 %v63
  %v102 = vpop.f32.mrf.mxu0
  %v103 = vadd.f32 0.0, %v102
  %v104 = vpop.f32.mrf.mxu0
  %v105 = vpop.f32.mrf.mxu0
  %v106 = vadd.f32 0.0, %v105
  %v107 = vpop.f32.mrf.mxu0
  %108 = vmatprep.mubr.bf16.mxu0 0
  %109 = vmatmul.mubr.bf16.gmra.mxu0 %v66
  %v110 = vpop.f32.mrf.mxu0
  %v111 = vadd.f32 0.0, %v110
  %v112 = vpop.f32.mrf.mxu0
  %v113 = vpop.f32.mrf.mxu0
  %v114 = vadd.f32 0.0, %v113
  %v115 = vpop.f32.mrf.mxu0
  %116 = vdwg.mxu0
  %v117 = vld [vmem:[%s2] sm:$0x7]
  %v118 = vmul.f32 %v103, %v117
  %v120 = vrot.slane %v118, 1
  %v122 = vadd.f32 %v118, %v120
  %v123 = vrot.slane %v118, 2
  %v125 = vadd.f32 %v122, %v123
  %v127 = vrot.slane %v103, 3
  %v129 = vadd.f32 %v125, %v127
  %v131 = vrot.slane %v117, 4
  %v133 = vmul.f32 %v103, %v131
  %v135 = vrot.slane %v133, 1
  %v137 = vadd.f32 %v133, %v135
  %v138 = vrot.slane %v133, 2
  %v140 = vadd.f32 %v137, %v138
  %v141 = vadd.f32 %v140, %v127
  %v142 = vmul.f32 %v106, %v117
  %v144 = vrot.slane %v142, 1
  %v146 = vadd.f32 %v142, %v144
  %v147 = vrot.slane %v142, 2
  %v149 = vadd.f32 %v146, %v147
  %v151 = vrot.slane %v106, 3
  %v153 = vadd.f32 %v149, %v151
  %v155 = vrot.slane %v141, 3
  %v158 = vrot.slane %v153, 6
  %vm160 = vcmask 1040384
  %v161 = vsel %vm160, %v129, %v155
  %vm162 = vcmask 1041408
  %v163 = vsel %vm162, %v161, %v158
  %vm164 = vcmask 518144
  %165 = vst.msk [vmem:[%s3] sm:$0x7] %vm164, %v163
  %s166 = scalar_lea.vmem %s2, 4
  %v167 = vld [vmem:[%s166] sm:$0x7]
  %v168 = vmul.f32 %v111, %v167
  %v170 = vrot.slane %v168, 1
  %v172 = vadd.f32 %v168, %v170
  %v173 = vrot.slane %v168, 2
  %v175 = vadd.f32 %v172, %v173
  %v177 = vrot.slane %v111, 3
  %v179 = vadd.f32 %v175, %v177
  %v181 = vrot.slane %v167, 4
  %v183 = vmul.f32 %v111, %v181
  %v185 = vrot.slane %v183, 1
  %v187 = vadd.f32 %v183, %v185
  %v188 = vrot.slane %v183, 2
  %v190 = vadd.f32 %v187, %v188
  %v191 = vadd.f32 %v190, %v177
  %v192 = vmul.f32 %v114, %v167
  %v194 = vrot.slane %v192, 1
  %v196 = vadd.f32 %v192, %v194
  %v197 = vrot.slane %v192, 2
  %v199 = vadd.f32 %v196, %v197
  %v201 = vrot.slane %v114, 3
  %v203 = vadd.f32 %v199, %v201
  %v205 = vrot.slane %v191, 3
  %v208 = vrot.slane %v203, 6
  %v210 = vsel %vm160, %v179, %v205
  %v211 = vsel %vm162, %v210, %v208
  %s212 = scalar_lea.vmem %s3, 4
  %213 = vst.msk [vmem:[%s212] sm:$0x7] %vm164, %v211
  // Predicated region
  $region14: #{core.3} parent=0 // pred_check
    _
  $region15: #{core.3} parent=0 // pred_check_branch
    %215 = sbr.rel (0) target = $region17
  $region16: #{core.3} parent=0 // pred_region
    _
  $region17: #{core.3} parent=0 // pred_fallthru
    _
  // Predicated region
  $region18: #{core.3} parent=0 // pred_check
    _
  $region19: #{core.3} parent=0 // pred_check_branch
    %217 = sbr.rel (0) target = $region21
  $region20: #{core.3} parent=0 // pred_region
    _
  $region21: #{core.3} parent=0 // pred_fallthru
    _

</llo_original>
